<compile_context>
chip_gen: v6e
topology: v6e:2x2x1
jax: 0.10.0
libtpu: 0.0.40
codegen_flags: <defaults>
</compile_context>

<pallas_src>
import numpy as np

import jax
import jax.numpy as jnp
from jax.experimental import pallas as pl
from jax.experimental.pallas import tpu as pltpu

MAXC = 16  # padded group size (the module spec caps context lengths at 10)


def _round_up(x, m):
  return (x + m - 1) // m * m


def _cdiv(a, b):
  return -(-a // b)


def _default_vmem_limit():
  # v5e/v6e have 128 MiB of VMEM per core, v7x only 64 MiB; leave headroom.
  try:
    cap = int(pltpu.get_tpu_info().vmem_capacity_bytes)
  except Exception:
    cap = 64 << 20
  return int(min(max(cap - (16 << 20), 32 << 20), 96 << 20))


_VMEM_LIMIT = _default_vmem_limit()


# --------------------------------------------------------------------------
# Kernel A:  z_src[i] = src_simil[i] . w_src          (lane-dense (1, n) out)
# --------------------------------------------------------------------------
def _zsrc_kernel(x_ref, w_ref, o_ref):
  x = x_ref[...].astype(jnp.float32)          # (tr, E)  upcast per tile
  w = w_ref[...]                              # (1, E)   f32, VMEM-resident
  # (1,E) contracted with (tr,E) over E  ->  (1, tr): rows land on lanes, so
  # the store/writeback is lane-dense instead of a (tr,1) masked-store column.
  o_ref[...] = jax.lax.dot_general(
      w, x, dimension_numbers=(((1,), (1,)), ((), ())),
      preferred_element_type=jnp.float32)


def _pick_row_tiles(n, e, itemsize):
  """Rows per grid step for kernel A: ~4 MiB input blocks, mult. of 128."""
  n128 = _round_up(max(n, 1), 128)
  tr = (4 << 20) // max(1, e * itemsize)
  tr = max(512, min(8192, tr))
  tr = max(128, (tr // 128) * 128)
  if n128 <= tr:
    return n128, n128                          # single full-extent tile
  ntiles = _cdiv(n128, tr)
  tr = _round_up(_cdiv(n128, ntiles), 128)     # balance tiles -> less padding
  return tr, ntiles * tr


def _zsrc_call(x, w_row):
  """z[i] = x[i] . w  for all rows; returns (n,) float32."""
  n, e = x.shape
  itemsize = x.dtype.itemsize
  tr, n_pad = _pick_row_tiles(n, e, itemsize)
  if n_pad != n:
    x = jnp.pad(x, ((0, n_pad - n), (0, 0)))
  out = pl.pallas_call(
      _zsrc_kernel,
      out_shape=jax.ShapeDtypeStruct((1, n_pad), jnp.float32),
      grid=(n_pad // tr,),
      in_specs=[
          pl.BlockSpec((tr, e), lambda i: (i, 0)),
          pl.BlockSpec((1, e), lambda i: (0, 0)),   # weight stays resident
      ],
      out_specs=pl.BlockSpec((1, tr), lambda i: (0, i)),
      compiler_params=pltpu.CompilerParams(
          dimension_semantics=("parallel",),
          vmem_limit_bytes=_VMEM_LIMIT),
      cost_estimate=pl.CostEstimate(
          flops=2 * n_pad * e, transcendentals=0,
          bytes_accessed=n_pad * e * itemsize + n_pad * 4 + e * 4),
  )(x, w_row)
  return out[0, :n]


# --------------------------------------------------------------------------
# Kernel B: fused  z_q matvec + bias'd ReLU + ragged masked softmax + argmax.
# Lane-dense transposed layout: MAXC on sublanes, batch on lanes.
# --------------------------------------------------------------------------
def _softmax_argmax_kernel(z_ref, qT_ref, wq_ref, len_ref, sim_ref, idx_ref):
  # zq[b] = q_simil[b] . w_q, computed from the transposed q tile so the
  # result is already a lane-dense (1, TB) row (fused: no extra pallas_call).
  zq = jnp.dot(wq_ref[...], qT_ref[...].astype(jnp.float32),
               preferred_element_type=jnp.float32)            # (1, TB)
  z = jnp.maximum(z_ref[...] + zq, jnp.float32(0.0))          # ReLU(Wx + b)

  lens = len_ref[...]                                          # (1, TB) int32
  row = jax.lax.broadcasted_iota(jnp.int32, z.shape, 0)        # (MAXC, TB)
  valid = row < lens

  z_m = jnp.where(valid, z, jnp.float32(-1e30))
  m = jnp.max(z_m, axis=0, keepdims=True)                      # (1, TB)
  ez = jnp.exp(z_m - m) * valid.astype(jnp.float32)
  denom = jnp.sum(ez, axis=0, keepdims=True)
  # Guard empty / padded groups (denom == 0) -> output row stays 0.
  inv = pl.reciprocal(jnp.maximum(denom, jnp.float32(1e-30)), approx=False)
  sim_ref[...] = ez * inv

  # First index attaining the max (matches torch/np argmax tie behavior).
  cand = jnp.where(jnp.logical_and(z_m >= m, valid), row, jnp.int32(MAXC))
  idx_ref[...] = jnp.min(cand, axis=0, keepdims=True)


def _pick_batch_tiles(b, e, itemsize):
  """Batch lanes per grid step for kernel B."""
  del itemsize  # budget assumes f32 temporaries (conservative)
  b128 = _round_up(max(b, 1), 128)
  cap = (2 << 20) // max(1, 4 * e)             # keep the q tile <= ~2 MiB
  cap = max(256, min(8192, cap))
  cap = max(128, (cap // 128) * 128)
  if b128 <= 128:
    return b128, b128
  # >= 2 grid steps so both v7x TensorCores get work; balanced to limit pad.
  ntiles = max(2, _cdiv(b128, cap))
  tb = _round_up(_cdiv(b128, ntiles), 128)
  return tb, ntiles * tb


def _softmax_argmax_call(z_pad_t, qT, wq_row, lens_t, tb):
  maxc, b_pad = z_pad_t.shape
  e = qT.shape[0]
  return pl.pallas_call(
      _softmax_argmax_kernel,
      out_shape=(jax.ShapeDtypeStruct((maxc, b_pad), jnp.float32),
                 jax.ShapeDtypeStruct((1, b_pad), jnp.int32)),
      grid=(b_pad // tb,),
      in_specs=[
          pl.BlockSpec((maxc, tb), lambda i: (0, i)),
          pl.BlockSpec((e, tb), lambda i: (0, i)),
          pl.BlockSpec((1, e), lambda i: (0, 0)),   # w_q stays resident
          pl.BlockSpec((1, tb), lambda i: (0, i)),
      ],
      out_specs=(pl.BlockSpec((maxc, tb), lambda i: (0, i)),
                 pl.BlockSpec((1, tb), lambda i: (0, i))),
      compiler_params=pltpu.CompilerParams(
          dimension_semantics=("parallel",),
          vmem_limit_bytes=_VMEM_LIMIT),
      cost_estimate=pl.CostEstimate(
          flops=2 * e * b_pad + 12 * maxc * b_pad,
          transcendentals=maxc * b_pad,
          bytes_accessed=(2 * maxc * b_pad + 3 * b_pad + e) * 4
                         + e * b_pad * qT.dtype.itemsize),
  )(z_pad_t, qT, wq_row, lens_t)


# --------------------------------------------------------------------------
# Forward wrapper (JAX glue: ragged offsets, tiny scalar gather, row select).
# --------------------------------------------------------------------------
@jax.jit
def mlp_similarity_forward(sources, src_simil, q_simil, context_len, weight,
                           bias):
  """Returns (selected_sources (b, S) int32, similarity_tensor (b, 10) f32)."""
  b = context_len.shape[0]
  bc, e_dim = src_simil.shape
  # NOTE: groups longer than MAXC (=16) would be truncated; the module spec
  # caps context lengths at 10, so this never triggers.

  context_len = context_len.astype(jnp.int32)
  offsets = jnp.concatenate(
      [jnp.zeros((1,), jnp.int32),
       jnp.cumsum(context_len)[:-1].astype(jnp.int32)])            # (b,)

  w_f = weight.astype(jnp.float32)                                 # (1, 2E)
  w_src_row = w_f[:, :e_dim]                                       # (1, E)
  w_q_row = w_f[:, e_dim:]                                         # (1, E)
  bias_f = bias.astype(jnp.float32)[0]

  # Kernel A: compact matvec over the bulk rows (native dtype in, f32 out).
  z_src = _zsrc_call(src_simil, w_src_row)                         # (bc,)

  # Tiny gather of per-row scalars into the padded, transposed, lane-dense
  # layout; fold the Linear bias in here (rows past each group are masked).
  gather_idx = jnp.clip(
      offsets[:, None] + jnp.arange(MAXC, dtype=jnp.int32)[None, :], 0, bc - 1)
  z_pad_t = z_src[gather_idx].T + bias_f                           # (MAXC, b)

  # Batch tiling for kernel B (>=2 tiles when b > 128; padding-balanced).
  tb, b_pad = _pick_batch_tiles(b, e_dim, q_simil.dtype.itemsize)
  pad_b = b_pad - b
  z_pad_t = jnp.pad(z_pad_t, ((0, 0), (0, pad_b)))
  qT = jnp.pad(q_simil.T, ((0, 0), (0, pad_b)))                    # (E, b_pad)
  lens_t = jnp.pad(context_len.reshape(1, b), ((0, 0), (0, pad_b)))

  sim_t, amax_t = _softmax_argmax_call(z_pad_t, qT, w_q_row, lens_t, tb)

  similarity_tensor = sim_t[:10, :b].T                             # (b, 10)
  amax = amax_t[0, :b]                                             # (b,)
  # Empty-group guard: clamp argmax into [0, len-1] (0 when len == 0).
  max_idx = jnp.clip(amax, 0, jnp.maximum(context_len - 1, 0))
  sel = offsets + max_idx
  sources_out = jnp.take(sources, sel, axis=0)
  return sources_out, similarity_tensor


# --------------------------------------------------------------------------
# Pure NumPy reference (mirrors the torch module) for verification.
# --------------------------------------------------------------------------
def _reference_forward(sources, src_simil, q_simil, context_len, weight, bias):
  sources = np.asarray(sources)
  src_simil = np.asarray(src_simil, np.float64)
  q_simil = np.asarray(q_simil, np.float64)
  weight = np.asarray(weight, np.float64)
  bias = np.asarray(bias, np.float64)
  b = len(context_len)
  idx = 0
  sims, srcs = [], []
  for i, c in enumerate(list(np.asarray(context_len))):
    c = int(c)
    cat = np.concatenate(
        [src_simil[idx:idx + c],
         np.tile(q_simil[i:i + 1], (c, 1))], axis=1)               # (c, 2E)
    z = cat @ weight[0] + bias[0]
    z = np.maximum(z, 0.0)
    ez = np.exp(z - z.max())
    s = ez / ez.sum()
    sims.append(s)
    srcs.append(sources[idx + int(np.argmax(s))])
    idx += c
  sim_t = np.zeros((b, 10), np.float64)
  for i, s in enumerate(sims):
    sim_t[i, :len(s)] = s
  return np.stack(srcs, 0), sim_t


if __name__ == "__main__":
  # Small deterministic config: b=2 questions, embed=32, context lens 3 and 5
  # (-> bc=8 context sentences), source sequences of length 16.
  b = 2
  embed = 32
  seq = 16
  context_len = jnp.array([3, 5], dtype=jnp.int32)
  bc = int(np.sum(np.asarray(context_len)))

  key = jax.random.PRNGKey(0)
  k1, k2, k3, k4, k5 = jax.random.split(key, 5)

  sources = jax.random.randint(k1, (bc, seq), 0, 1000, dtype=jnp.int32)
  src_simil = jax.random.normal(k2, (bc, embed), dtype=jnp.float32)
  q_simil = jax.random.normal(k3, (b, embed), dtype=jnp.float32)

  bound = 1.0 / np.sqrt(2 * embed)
  weight = jax.random.uniform(k4, (1, 2 * embed), jnp.float32, -bound, bound)
  bias = jax.random.uniform(k5, (1,), jnp.float32, -bound, bound)

  out_sources, out_sim = mlp_similarity_forward(
      sources, src_simil, q_simil, context_len, weight, bias)
  jax.block_until_ready((out_sources, out_sim))

  ref_sources, ref_sim = _reference_forward(
      sources, src_simil, q_simil, context_len, weight, bias)

  assert out_sources.shape == (b, seq)
  assert out_sim.shape == (b, 10)
  np.testing.assert_allclose(np.asarray(out_sim), ref_sim, atol=1e-5, rtol=1e-5)
  np.testing.assert_array_equal(np.asarray(out_sources), ref_sources)

  print("KERNEL_OK")
</pallas_src>

<mosaic_0001>
module attributes {stable_mosaic.version = 11 : i64} {
  func.func @_zsrc_kernel(%arg0: i32, %arg1: memref<128x32xf32, #tpu.memory_space<vmem>>, %arg2: memref<1x32xf32, #tpu.memory_space<vmem>>, %arg3: memref<1x128xf32, #tpu.memory_space<vmem>>) attributes {dimension_semantics = [#tpu.dimension_semantics<parallel>], iteration_bounds = array<i64: 1>, scalar_prefetch = 0 : i64, scratch_operands = 0 : i64, tpu.core_type = #tpu.core_type<tc>, window_params = [{transform_indices = @transform_0, window_bounds = array<i64: 128, 32>}, {pipeline_mode = #tpu.pipeline_mode<synchronous>, transform_indices = @transform_1, window_bounds = array<i64: 1, 32>}, {transform_indices = @transform_2, window_bounds = array<i64: 1, 128>}]} {
    %c0 = arith.constant 0 : index
    %c0_0 = arith.constant 0 : index
    %0 = vector.load %arg1[%c0, %c0_0] : memref<128x32xf32, #tpu.memory_space<vmem>>, vector<128x32xf32>
    %c0_1 = arith.constant 0 : index
    %c0_2 = arith.constant 0 : index
    %1 = vector.load %arg2[%c0_1, %c0_2] : memref<1x32xf32, #tpu.memory_space<vmem>>, vector<1x32xf32>
    %cst = arith.constant dense<0.000000e+00> : vector<1x128xf32>
    %2 = tpu.matmul %1, %0, %cst {dimension_numbers = #tpu.dot_dimension_numbers<[1], [1], [0], [0], [0, 0, 1, 0], [], []>} : vector<1x32xf32>, vector<128x32xf32>, vector<1x128xf32> -> vector<1x128xf32>
    %c0_3 = arith.constant 0 : index
    %c0_4 = arith.constant 0 : index
    %3 = vector.load %arg3[%c0_3, %c0_4] : memref<1x128xf32, #tpu.memory_space<vmem>>, vector<1x128xf32>
    tpu.vector_store %arg3[%c0_3, %c0_4], %2 {strides = array<i32>} : memref<1x128xf32, #tpu.memory_space<vmem>>, vector<1x128xf32>,
    return
  }
  func.func @transform_0(%arg0: i32) -> (i32, i32) {
    %c0_i32 = arith.constant 0 : i32
    %c0_i32_0 = arith.constant 0 : i32
    return %arg0, %c0_i32 : i32, i32
  }
  func.func @transform_1(%arg0: i32) -> (i32, i32) {
    %c0_i32 = arith.constant 0 : i32
    %c0_i32_0 = arith.constant 0 : i32
    %c0_i32_1 = arith.constant 0 : i32
    return %c0_i32, %c0_i32_0 : i32, i32
  }
  func.func @transform_2(%arg0: i32) -> (i32, i32) {
    %c0_i32 = arith.constant 0 : i32
    %c0_i32_0 = arith.constant 0 : i32
    return %c0_i32, %arg0 : i32, i32
  }
}

module attributes {stable_mosaic.version = 11 : i64} {
  func.func @_softmax_argmax_kernel(%arg0: i32, %arg1: memref<16x128xf32, #tpu.memory_space<vmem>>, %arg2: memref<32x128xf32, #tpu.memory_space<vmem>>, %arg3: memref<1x32xf32, #tpu.memory_space<vmem>>, %arg4: memref<1x128xi32, #tpu.memory_space<vmem>>, %arg5: memref<16x128xf32, #tpu.memory_space<vmem>>, %arg6: memref<1x128xi32, #tpu.memory_space<vmem>>) attributes {dimension_semantics = [#tpu.dimension_semantics<parallel>], iteration_bounds = array<i64: 1>, scalar_prefetch = 0 : i64, scratch_operands = 0 : i64, tpu.core_type = #tpu.core_type<tc>, window_params = [{transform_indices = @transform_0, window_bounds = array<i64: 16, 128>}, {transform_indices = @transform_1, window_bounds = array<i64: 32, 128>}, {pipeline_mode = #tpu.pipeline_mode<synchronous>, transform_indices = @transform_2, window_bounds = array<i64: 1, 32>}, {transform_indices = @transform_3, window_bounds = array<i64: 1, 128>}, {transform_indices = @transform_4, window_bounds = array<i64: 16, 128>}, {transform_indices = @transform_5, window_bounds = array<i64: 1, 128>}]} {
    %c0 = arith.constant 0 : index
    %c0_0 = arith.constant 0 : index
    %0 = vector.load %arg3[%c0, %c0_0] : memref<1x32xf32, #tpu.memory_space<vmem>>, vector<1x32xf32>
    %c0_1 = arith.constant 0 : index
    %c0_2 = arith.constant 0 : index
    %1 = vector.load %arg2[%c0_1, %c0_2] : memref<32x128xf32, #tpu.memory_space<vmem>>, vector<32x128xf32>
    %cst = arith.constant dense<0.000000e+00> : vector<1x128xf32>
    %2 = tpu.matmul %0, %1, %cst {dimension_numbers = #tpu.dot_dimension_numbers<[1], [0], [0], [1], [0, 0, 1, 1], [], []>} : vector<1x32xf32>, vector<32x128xf32>, vector<1x128xf32> -> vector<1x128xf32>
    %c0_3 = arith.constant 0 : index
    %c0_4 = arith.constant 0 : index
    %3 = vector.load %arg1[%c0_3, %c0_4] : memref<16x128xf32, #tpu.memory_space<vmem>>, vector<16x128xf32>
    %4 = vector.broadcast %2 : vector<1x128xf32> to vector<16x128xf32>
    %5 = arith.addf %3, %4 : vector<16x128xf32>
    %cst_5 = arith.constant 0.000000e+00 : f32
    %6 = vector.broadcast %cst_5 : f32 to vector<16x128xf32>
    %7 = arith.maximumf %5, %6 : vector<16x128xf32>
    %c0_6 = arith.constant 0 : index
    %c0_7 = arith.constant 0 : index
    %8 = vector.load %arg4[%c0_6, %c0_7] : memref<1x128xi32, #tpu.memory_space<vmem>>, vector<1x128xi32>
    %9 = tpu.iota {dimensions = array<i32: 0>} : vector<16x128xi32>
    %10 = vector.broadcast %8 : vector<1x128xi32> to vector<16x128xi32>
    %11 = arith.cmpi slt, %9, %10 : vector<16x128xi32>
    %cst_8 = arith.constant -1.000000e+30 : f32
    %12 = vector.broadcast %cst_8 : f32 to vector<16x128xf32>
    %13 = arith.select %11, %7, %12 : vector<16x128xi1>, vector<16x128xf32>
    %cst_9 = arith.constant dense<0xFF800000> : vector<128xf32>
    %14 = vector.multi_reduction <maximumf>, %13, %cst_9 [0] : vector<16x128xf32> to vector<128xf32>
    %15 = vector.shape_cast %14 : vector<128xf32> to vector<1x128xf32>
    %16 = vector.broadcast %15 : vector<1x128xf32> to vector<16x128xf32>
    %17 = arith.subf %13, %16 : vector<16x128xf32>
    %18 = math.exp %17 : vector<16x128xf32>
    %19 = arith.extui %11 : vector<16x128xi1> to vector<16x128xi32>
    %20 = arith.sitofp %19 : vector<16x128xi32> to vector<16x128xf32>
    %21 = arith.mulf %18, %20 : vector<16x128xf32>
    %cst_10 = arith.constant dense<0.000000e+00> : vector<128xf32>
    %22 = vector.multi_reduction <add>, %21, %cst_10 [0] : vector<16x128xf32> to vector<128xf32>
    %23 = vector.shape_cast %22 : vector<128xf32> to vector<1x128xf32>
    %cst_11 = arith.constant 1.000000e-30 : f32
    %24 = vector.broadcast %cst_11 : f32 to vector<1x128xf32>
    %25 = arith.maximumf %23, %24 : vector<1x128xf32>
    %26 = tpu.reciprocal %25 : vector<1x128xf32> -> vector<1x128xf32>
    %27 = vector.broadcast %26 : vector<1x128xf32> to vector<16x128xf32>
    %28 = arith.mulf %21, %27 : vector<16x128xf32>
    %c0_12 = arith.constant 0 : index
    %c0_13 = arith.constant 0 : index
    %29 = vector.load %arg5[%c0_12, %c0_13] : memref<16x128xf32, #tpu.memory_space<vmem>>, vector<16x128xf32>
    tpu.vector_store %arg5[%c0_12, %c0_13], %28 {strides = array<i32>} : memref<16x128xf32, #tpu.memory_space<vmem>>, vector<16x128xf32>,
    %30 = vector.broadcast %15 : vector<1x128xf32> to vector<16x128xf32>
    %31 = arith.cmpf oge, %13, %30 : vector<16x128xf32>
    %32 = arith.andi %31, %11 : vector<16x128xi1>
    %c16_i32 = arith.constant 16 : i32
    %33 = vector.broadcast %c16_i32 : i32 to vector<16x128xi32>
    %34 = arith.select %32, %9, %33 : vector<16x128xi1>, vector<16x128xi32>
    %cst_14 = arith.constant dense<2147483647> : vector<128xi32>
    %35 = vector.multi_reduction <minsi>, %34, %cst_14 [0] : vector<16x128xi32> to vector<128xi32>
    %36 = vector.shape_cast %35 : vector<128xi32> to vector<1x128xi32>
    %c0_15 = arith.constant 0 : index
    %c0_16 = arith.constant 0 : index
    %37 = vector.load %arg6[%c0_15, %c0_16] : memref<1x128xi32, #tpu.memory_space<vmem>>, vector<1x128xi32>
    tpu.vector_store %arg6[%c0_15, %c0_16], %36 {strides = array<i32>} : memref<1x128xi32, #tpu.memory_space<vmem>>, vector<1x128xi32>,
    return
  }
  func.func @transform_0(%arg0: i32) -> (i32, i32) {
    %c0_i32 = arith.constant 0 : i32
    %c0_i32_0 = arith.constant 0 : i32
    return %c0_i32, %arg0 : i32, i32
  }
  func.func @transform_1(%arg0: i32) -> (i32, i32) {
    %c0_i32 = arith.constant 0 : i32
    %c0_i32_0 = arith.constant 0 : i32
    return %c0_i32, %arg0 : i32, i32
  }
  func.func @transform_2(%arg0: i32) -> (i32, i32) {
    %c0_i32 = arith.constant 0 : i32
    %c0_i32_0 = arith.constant 0 : i32
    %c0_i32_1 = arith.constant 0 : i32
    return %c0_i32, %c0_i32_0 : i32, i32
  }
  func.func @transform_3(%arg0: i32) -> (i32, i32) {
    %c0_i32 = arith.constant 0 : i32
    %c0_i32_0 = arith.constant 0 : i32
    return %c0_i32, %arg0 : i32, i32
  }
  func.func @transform_4(%arg0: i32) -> (i32, i32) {
    %c0_i32 = arith.constant 0 : i32
    %c0_i32_0 = arith.constant 0 : i32
    return %c0_i32, %arg0 : i32, i32
  }
  func.func @transform_5(%arg0: i32) -> (i32, i32) {
    %c0_i32 = arith.constant 0 : i32
    %c0_i32_0 = arith.constant 0 : i32
    return %c0_i32, %arg0 : i32, i32
  }
}

</mosaic_0001>

<llo_original>
// kernel: mlp_similarity_forward.2
$region0: #{mlp_similarity_forward.2}
  #allocation0 [shape = 'u32[]', space=smem, size = 0x4, offset = 0x4, fixed_abs, tag = 'smem constant byte address 0x4 - core index']
  #allocation1 [shape = 'u32[144,128]{1,0:T(1,128)}', space=vmem, size = 0x12000, scoped, tag = 'internal scratch']
  %s0 = inlined_call_operand.vmem [shape: f32[128,32], index: 0, kind: input, shape index: {}]
  %s1 = inlined_call_operand.vmem [shape: f32[1,32], index: 1, kind: input, shape index: {}]
  %s2 = inlined_call_operand.vmem [shape: f32[1,128], index: 2, kind: output, shape index: {}]
  %s3 = sld [smem:[#allocation0]]
  $region18: #{mlp_similarity_forward.2} parent=0
    _
  %s5 = ssub.s32 1, %s3
  %s6 = scalar_select 0, %s5, %s3
  // Predicated region
  $region2: #{mlp_similarity_forward.2} parent=0 // pred_check
    _
  $region3: #{mlp_similarity_forward.2} parent=0 // pred_check_branch
    %8 = sbr.rel (0) target = $region5
  $region4: #{mlp_similarity_forward.2} parent=0 // pred_region
    _
  $region5: #{mlp_similarity_forward.2} parent=0 // pred_fallthru
    _
  // Predicated region
  $region6: #{mlp_similarity_forward.2} parent=0 // pred_check
    _
  $region7: #{mlp_similarity_forward.2} parent=0 // pred_check_branch
    %10 = sbr.rel (0) target = $region9
  $region8: #{mlp_similarity_forward.2} parent=0 // pred_region
    _
  $region9: #{mlp_similarity_forward.2} parent=0 // pred_fallthru
    _
  %v11 = vld [vmem:[%s0] sm:$0xff]
  %v12 = vld [vmem:[%s0 + $0x8] sm:$0xff]
  %v13 = vld [vmem:[%s0 + $0x10] sm:$0xff]
  %v14 = vld [vmem:[%s0 + $0x18] sm:$0xff]
  %v15 = vld [vmem:[%s0 + $0x20] sm:$0xff]
  %v16 = vld [vmem:[%s0 + $0x28] sm:$0xff]
  %v17 = vld [vmem:[%s0 + $0x30] sm:$0xff]
  %v18 = vld [vmem:[%s0 + $0x38] sm:$0xff]
  %v19 = vld [vmem:[%s0 + $0x40] sm:$0xff]
  %v20 = vld [vmem:[%s0 + $0x48] sm:$0xff]
  %v21 = vld [vmem:[%s0 + $0x50] sm:$0xff]
  %v22 = vld [vmem:[%s0 + $0x58] sm:$0xff]
  %v23 = vld [vmem:[%s0 + $0x60] sm:$0xff]
  %v24 = vld [vmem:[%s0 + $0x68] sm:$0xff]
  %v25 = vld [vmem:[%s0 + $0x70] sm:$0xff]
  %v26 = vld [vmem:[%s0 + $0x78] sm:$0xff]
  %v27 = vld [vmem:[%s1] sm:$0x1]
  %vm28 = vcmask 261120
  %v30 = vsel %vm28, %v27, 0
  %v33 = vsel %vm28, %v11, 0
  %v36 = vsel %vm28, %v12, 0
  %v39 = vsel %vm28, %v13, 0
  %v42 = vsel %vm28, %v14, 0
  %v45 = vsel %vm28, %v15, 0
  %v48 = vsel %vm28, %v16, 0
  %v51 = vsel %vm28, %v17, 0
  %v54 = vsel %vm28, %v18, 0
  %v57 = vsel %vm28, %v19, 0
  %v60 = vsel %vm28, %v20, 0
  %v63 = vsel %vm28, %v21, 0
  %v66 = vsel %vm28, %v22, 0
  %v69 = vsel %vm28, %v23, 0
  %v72 = vsel %vm28, %v24, 0
  %v75 = vsel %vm28, %v25, 0
  %v78 = vsel %vm28, %v26, 0
  %80 = vmatprep.subr.mxu0 0.0
  %81 = vmatpush1.xpose.msra.mxu0 %v78
  %82 = vmatprep.subr.mxu0 0.0
  %83 = vmatpush1.xpose.msra.mxu0 %v75
  %84 = vmatprep.subr.mxu0 0.0
  %85 = vmatpush1.xpose.msra.mxu0 %v72
  %86 = vmatprep.subr.mxu0 0.0
  %87 = vmatpush1.xpose.msra.mxu0 %v69
  %88 = vmatprep.subr.mxu0 0.0
  %89 = vmatpush1.xpose.msra.mxu0 %v66
  %90 = vmatprep.subr.mxu0 0.0
  %91 = vmatpush1.xpose.msra.mxu0 %v63
  %92 = vmatprep.subr.mxu0 0.0
  %93 = vmatpush1.xpose.msra.mxu0 %v60
  %94 = vmatprep.subr.mxu0 0.0
  %95 = vmatpush1.xpose.msra.mxu0 %v57
  %96 = vmatprep.subr.mxu0 0.0
  %97 = vmatpush1.xpose.msra.mxu0 %v54
  %98 = vmatprep.subr.mxu0 0.0
  %99 = vmatpush1.xpose.msra.mxu0 %v51
  %100 = vmatprep.subr.mxu0 0.0
  %101 = vmatpush1.xpose.msra.mxu0 %v48
  %102 = vmatprep.subr.mxu0 0.0
  %103 = vmatpush1.xpose.msra.mxu0 %v45
  %104 = vmatprep.subr.mxu0 0.0
  %105 = vmatpush1.xpose.msra.mxu0 %v42
  %106 = vmatprep.subr.mxu0 0.0
  %107 = vmatpush1.xpose.msra.mxu0 %v39
  %108 = vmatprep.subr.mxu0 0.0
  %109 = vmatpush1.xpose.msra.mxu0 %v36
  %110 = vmatprep.subr.mxu0 0.0
  %111 = vmatpush1.xpose.msra.mxu0 %v33
  %112 = vmatprep.subr.mxu0 0.0
  %113 = vmatpush2.xpose.msra.mxu0 0.0
  %114 = vmatprep.subr.mxu0 0.0
  %115 = vmatpush2.xpose.msra.mxu0 0.0
  %116 = vmatprep.subr.mxu0 0.0
  %117 = vmatpush2.xpose.msra.mxu0 0.0
  %118 = vmatprep.subr.mxu0 0.0
  %119 = vmatpush2.xpose.msra.mxu0 0.0
  %120 = vmatprep.subr.mxu0 0.0
  %121 = vmatpush2.xpose.msra.mxu0 0.0
  %122 = vmatprep.subr.mxu0 0.0
  %123 = vmatpush2.xpose.msra.mxu0 0.0
  %124 = vmatprep.subr.mxu0 0.0
  %125 = vmatpush2.xpose.msra.mxu0 0.0
  %126 = vmatprep.subr.mxu0 0.0
  %127 = vmatpush2.xpose.msra.mxu0 0.0
  %128 = vmatprep.subr.mxu0 0.0
  %129 = vmatpush2.xpose.msra.mxu0 0.0
  %130 = vmatprep.subr.mxu0 0.0
  %131 = vmatpush2.xpose.msra.mxu0 0.0
  %132 = vmatprep.subr.mxu0 0.0
  %133 = vmatpush2.xpose.msra.mxu0 0.0
  %134 = vmatprep.subr.mxu0 0.0
  %135 = vmatpush2.xpose.msra.mxu0 0.0
  %136 = vmatprep.subr.mxu0 0.0
  %137 = vmatpush2.xpose.msra.mxu0 0.0
  %138 = vmatprep.subr.mxu0 0.0
  %139 = vmatpush2.xpose.msra.mxu0 0.0
  %140 = vmatprep.subr.mxu0 0.0
  %141 = vmatpush2.xpose.msra.mxu0 0.0
  %142 = vmatprep.subr.mxu0 0.0
  %143 = vmatpush2.xpose.msra.mxu0 0.0
  %144 = vmatprep.mubr.f32.mxu0 0.0
  %145 = vmatmul.mubr.f32.gmra.mxu0 %v30
  %v146 = vpop.f32.mrf.mxu0
  %v147 = vadd.f32 0.0, %v146
  %v148 = vpop.f32.mrf.mxu0
  %149 = vdwg.mxu0
  %150 = vst [vmem:[%s2] sm:$0x1] %v147
  // Predicated region
  $region10: #{mlp_similarity_forward.2} parent=0 // pred_check
    _
  $region11: #{mlp_similarity_forward.2} parent=0 // pred_check_branch
    %152 = sbr.rel (0) target = $region13
  $region12: #{mlp_similarity_forward.2} parent=0 // pred_region
    _
  $region13: #{mlp_similarity_forward.2} parent=0 // pred_fallthru
    _
  // Predicated region
  $region14: #{mlp_similarity_forward.2} parent=0 // pred_check
    _
  $region15: #{mlp_similarity_forward.2} parent=0 // pred_check_branch
    %154 = sbr.rel (0) target = $region17
  $region16: #{mlp_similarity_forward.2} parent=0 // pred_region
    _
  $region17: #{mlp_similarity_forward.2} parent=0 // pred_fallthru
    _

// kernel: mlp_similarity_forward.3
$region0: #{mlp_similarity_forward.3}
  #allocation0 [shape = 'u32[]', space=smem, size = 0x4, offset = 0x4, fixed_abs, tag = 'smem constant byte address 0x4 - core index']
  #allocation1 [shape = 'u32[144,128]{1,0:T(1,128)}', space=vmem, size = 0x12000, scoped, tag = 'internal scratch']
  %s0 = inlined_call_operand.vmem [shape: f32[16,128], index: 0, kind: input, shape index: {}]
  %s1 = inlined_call_operand.vmem [shape: f32[32,128], index: 1, kind: input, shape index: {}]
  %s2 = inlined_call_operand.vmem [shape: f32[1,32], index: 2, kind: input, shape index: {}]
  %s3 = inlined_call_operand.vmem [shape: s32[1,128], index: 3, kind: input, shape index: {}]
  %s4 = inlined_call_operand.vmem [shape: f32[16,128], index: 4, kind: output, shape index: {0}]
  %s5 = inlined_call_operand.vmem [shape: s32[1,128], index: 5, kind: output, shape index: {1}]
  %6 = xla_tuple %s4, %s5
  %s7 = sld [smem:[#allocation0]]
  $region34: #{mlp_similarity_forward.3} parent=0
    _
  %s9 = ssub.s32 1, %s7
  %s10 = scalar_select 0, %s9, %s7
  // Predicated region
  $region2: #{mlp_similarity_forward.3} parent=0 // pred_check
    _
  $region3: #{mlp_similarity_forward.3} parent=0 // pred_check_branch
    %12 = sbr.rel (0) target = $region5
  $region4: #{mlp_similarity_forward.3} parent=0 // pred_region
    _
  $region5: #{mlp_similarity_forward.3} parent=0 // pred_fallthru
    _
  // Predicated region
  $region6: #{mlp_similarity_forward.3} parent=0 // pred_check
    _
  $region7: #{mlp_similarity_forward.3} parent=0 // pred_check_branch
    %14 = sbr.rel (0) target = $region9
  $region8: #{mlp_similarity_forward.3} parent=0 // pred_region
    _
  $region9: #{mlp_similarity_forward.3} parent=0 // pred_fallthru
    _
  // Predicated region
  $region10: #{mlp_similarity_forward.3} parent=0 // pred_check
    _
  $region11: #{mlp_similarity_forward.3} parent=0 // pred_check_branch
    %16 = sbr.rel (0) target = $region13
  $region12: #{mlp_similarity_forward.3} parent=0 // pred_region
    _
  $region13: #{mlp_similarity_forward.3} parent=0 // pred_fallthru
    _
  // Predicated region
  $region14: #{mlp_similarity_forward.3} parent=0 // pred_check
    _
  $region15: #{mlp_similarity_forward.3} parent=0 // pred_check_branch
    %18 = sbr.rel (0) target = $region17
  $region16: #{mlp_similarity_forward.3} parent=0 // pred_region
    _
  $region17: #{mlp_similarity_forward.3} parent=0 // pred_fallthru
    _
  %v19 = vld [vmem:[%s2] sm:$0x1]
  %v20 = vld [vmem:[%s1] sm:$0xff]
  %v21 = vld [vmem:[%s1 + $0x8] sm:$0xff]
  %v22 = vld [vmem:[%s1 + $0x10] sm:$0xff]
  %v23 = vld [vmem:[%s1 + $0x18] sm:$0xff]
  %vm24 = vcmask 261120
  %v26 = vsel %vm24, %v19, 0
  %28 = vmatprep.subr.mxu0 0.0
  %29 = vmatpush1.msra.mxu0 0.0
  %30 = vmatprep.subr.mxu0 0.0
  %31 = vmatpush1.msra.mxu0 0.0
  %32 = vmatprep.subr.mxu0 0.0
  %33 = vmatpush1.msra.mxu0 0.0
  %34 = vmatprep.subr.mxu0 0.0
  %35 = vmatpush1.msra.mxu0 0.0
  %36 = vmatprep.subr.mxu0 0.0
  %37 = vmatpush1.msra.mxu0 0.0
  %38 = vmatprep.subr.mxu0 0.0
  %39 = vmatpush1.msra.mxu0 0.0
  %40 = vmatprep.subr.mxu0 0.0
  %41 = vmatpush1.msra.mxu0 0.0
  %42 = vmatprep.subr.mxu0 0.0
  %43 = vmatpush1.msra.mxu0 0.0
  %44 = vmatprep.subr.mxu0 0.0
  %45 = vmatpush1.msra.mxu0 0.0
  %46 = vmatprep.subr.mxu0 0.0
  %47 = vmatpush1.msra.mxu0 0.0
  %48 = vmatprep.subr.mxu0 0.0
  %49 = vmatpush1.msra.mxu0 0.0
  %50 = vmatprep.subr.mxu0 0.0
  %51 = vmatpush1.msra.mxu0 0.0
  %52 = vmatprep.subr.mxu0 0.0
  %53 = vmatpush1.msra.mxu0 %v23
  %54 = vmatprep.subr.mxu0 0.0
  %55 = vmatpush1.msra.mxu0 %v22
  %56 = vmatprep.subr.mxu0 0.0
  %57 = vmatpush1.msra.mxu0 %v21
  %58 = vmatprep.subr.mxu0 0.0
  %59 = vmatpush1.msra.mxu0 %v20
  %60 = vmatprep.subr.mxu0 0.0
  %61 = vmatpush2.msra.mxu0 0.0
  %62 = vmatprep.subr.mxu0 0.0
  %63 = vmatpush2.msra.mxu0 0.0
  %64 = vmatprep.subr.mxu0 0.0
  %65 = vmatpush2.msra.mxu0 0.0
  %66 = vmatprep.subr.mxu0 0.0
  %67 = vmatpush2.msra.mxu0 0.0
  %68 = vmatprep.subr.mxu0 0.0
  %69 = vmatpush2.msra.mxu0 0.0
  %70 = vmatprep.subr.mxu0 0.0
  %71 = vmatpush2.msra.mxu0 0.0
  %72 = vmatprep.subr.mxu0 0.0
  %73 = vmatpush2.msra.mxu0 0.0
  %74 = vmatprep.subr.mxu0 0.0
  %75 = vmatpush2.msra.mxu0 0.0
  %76 = vmatprep.subr.mxu0 0.0
  %77 = vmatpush2.msra.mxu0 0.0
  %78 = vmatprep.subr.mxu0 0.0
  %79 = vmatpush2.msra.mxu0 0.0
  %80 = vmatprep.subr.mxu0 0.0
  %81 = vmatpush2.msra.mxu0 0.0
  %82 = vmatprep.subr.mxu0 0.0
  %83 = vmatpush2.msra.mxu0 0.0
  %84 = vmatprep.subr.mxu0 0.0
  %85 = vmatpush2.msra.mxu0 0.0
  %86 = vmatprep.subr.mxu0 0.0
  %87 = vmatpush2.msra.mxu0 0.0
  %88 = vmatprep.subr.mxu0 0.0
  %89 = vmatpush2.msra.mxu0 0.0
  %90 = vmatprep.subr.mxu0 0.0
  %91 = vmatpush2.msra.mxu0 0.0
  %92 = vmatprep.mubr.f32.mxu0 0.0
  %93 = vmatmul.mubr.f32.gmra.mxu0 %v26
  %v94 = vpop.f32.mrf.mxu0
  %v95 = vadd.f32 0.0, %v94
  %v96 = vpop.f32.mrf.mxu0
  %97 = vdwg.mxu0
  %v98 = vld [vmem:[%s0] sm:$0xff]
  %v99 = vld [vmem:[%s0 + $0x8] sm:$0xff]
  %v100 = vlaneseq
  %v101 = vshrl.u32 %v100, 7
  %v102 = vsub.s32 0, %v101
  %v103 = vrot.slane %v95, %v102
  %v104 = vadd.f32 %v98, %v103
  %v105 = vadd.f32 %v99, %v103
  %v106 = vmax.f32 %v104, 0.0
  %v107 = vmax.f32 %v105, 0.0
  %v108 = vld [vmem:[%s3] sm:$0x1]
  %v109 = vlaneseq
  %v110 = vshrl.u32 %v109, 7
  %v111 = vadd.s32 %v110, 8
  %v112 = vlaneseq
  %v113 = vshrl.u32 %v112, 7
  %v114 = vsub.s32 0, %v113
  %v115 = vrot.slane %v108, %v114
  %vm116 = vcmp.lt.s32.totalorder %v110, %v115
  %vm117 = vcmp.lt.s32.totalorder %v111, %v115
  %v118 = vsel %vm116, %v106, -1e+30
  %v119 = vsel %vm117, %v107, -1e+30
  %v120 = vmax.f32 %v118, %v119
  %v121 = vrot.slane %v120, 4
  %v122 = vmax.f32 %v120, %v121
  %v123 = vrot.slane %v122, 2
  %v124 = vmax.f32 %v122, %v123
  %v125 = vrot.slane %v124, 1
  %v126 = vmax.f32 %v124, %v125
  %v127 = vsub.f32 %v118, %v126
  %v128 = vsub.f32 %v119, %v126
  %v129 = vmul.f32 %v127, 1.442695
  %v130 = vpow.pop %v129
  %v131 = vmul.f32 %v128, 1.442695
  %v132 = vpow.pop %v131
  %v133 = vsel %vm116, 1, 0
  %v134 = vsel %vm117, 1, 0
  %v135 = vcvt.s32.f32 %v133
  %v136 = vcvt.s32.f32 %v134
  %v137 = vmul.f32 %v130, %v135
  %v138 = vmul.f32 %v132, %v136
  %v139 = vadd.f32 %v137, %v138
  %v140 = vrot.slane %v139, 4
  %v141 = vadd.f32 %v139, %v140
  %v142 = vrot.slane %v141, 2
  %v143 = vadd.f32 %v141, %v142
  %v144 = vrot.slane %v143, 1
  %v145 = vadd.f32 %v143, %v144
  %v146 = vmax.f32 %v145, 1e-30
  %v147 = vrcp.pop %v146
  %v148 = vmul.f32 %v137, %v147
  %v149 = vmul.f32 %v138, %v147
  %150 = vst [vmem:[%s4] sm:$0xff] %v148
  %151 = vst [vmem:[%s4 + $0x8] sm:$0xff] %v149
  %vm152 = vcmp.ge.f32.partialorder %v118, %v126
  %vm153 = vcmp.ge.f32.partialorder %v119, %v126
  %vm154 = vmand %vm152, %vm116
  %vm155 = vmand %vm153, %vm117
  %v156 = vsel %vm154, %v110, 16
  %v157 = vsel %vm155, %v111, 16
  %vm158 = vcmp.lt.s32.totalorder %v156, %v157
  %v159 = vsel %vm158, %v156, %v157
  %v160 = vrot.slane %v159, 4
  %vm161 = vcmp.lt.s32.totalorder %v159, %v160
  %v162 = vsel %vm161, %v159, %v160
  %v163 = vrot.slane %v162, 2
  %vm164 = vcmp.lt.s32.totalorder %v162, %v163
  %v165 = vsel %vm164, %v162, %v163
  %v166 = vrot.slane %v165, 1
  %vm167 = vcmp.lt.s32.totalorder %v165, %v166
  %v168 = vsel %vm167, %v165, %v166
  %169 = vst [vmem:[%s5] sm:$0x1] %v168
  // Predicated region
  $region18: #{mlp_similarity_forward.3} parent=0 // pred_check
    _
  $region19: #{mlp_similarity_forward.3} parent=0 // pred_check_branch
    %171 = sbr.rel (0) target = $region21
  $region20: #{mlp_similarity_forward.3} parent=0 // pred_region
    _
  $region21: #{mlp_similarity_forward.3} parent=0 // pred_fallthru
    _
  // Predicated region
  $region22: #{mlp_similarity_forward.3} parent=0 // pred_check
    _
  $region23: #{mlp_similarity_forward.3} parent=0 // pred_check_branch
    %173 = sbr.rel (0) target = $region25
  $region24: #{mlp_similarity_forward.3} parent=0 // pred_region
    _
  $region25: #{mlp_similarity_forward.3} parent=0 // pred_fallthru
    _
  // Predicated region
  $region26: #{mlp_similarity_forward.3} parent=0 // pred_check
    _
  $region27: #{mlp_similarity_forward.3} parent=0 // pred_check_branch
    %175 = sbr.rel (0) target = $region29
  $region28: #{mlp_similarity_forward.3} parent=0 // pred_region
    _
  $region29: #{mlp_similarity_forward.3} parent=0 // pred_fallthru
    _
  // Predicated region
  $region30: #{mlp_similarity_forward.3} parent=0 // pred_check
    _
  $region31: #{mlp_similarity_forward.3} parent=0 // pred_check_branch
    %177 = sbr.rel (0) target = $region33
  $region32: #{mlp_similarity_forward.3} parent=0 // pred_region
    _
  $region33: #{mlp_similarity_forward.3} parent=0 // pred_fallthru
    _

</llo_original>
